<compile_context>
chip_gen: v7x
topology: tpu7x:2x2x1
jax: 0.10.0
libtpu: 0.0.40
codegen_flags: <defaults>
</compile_context>

<pallas_src>
import functools

import jax
import jax.numpy as jnp
from jax.experimental import pallas as pl
from jax.experimental.pallas import tpu as pltpu

HIDDEN = 70        # hidden width of the PyTorch module
HIDDEN_PAD = 128   # padded to a full lane width for aligned MXU/vector tiles


def mlp_kernel(x_ref, w1_ref, b1_ref, w2_ref, b2_ref, o_ref):
    # hidden_layer: x @ W1 + b1.  x is cast to bf16 here (in-kernel, pipelined)
    # so HBM only ever sees the original f32 x once; f32 accumulation on MXU.
    x = x_ref[...].astype(jnp.bfloat16)
    h = jnp.dot(x, w1_ref[...], preferred_element_type=jnp.float32)
    h = h + b1_ref[...]                      # (tb,128) + (1,128) broadcast, f32
    # activation_layer: sigmoid(h) == 0.5*(1 + tanh(0.5*h)).
    # Single EUP push (tanh) per element; exact sigmoid, no approx reciprocal.
    h = 0.5 * (1.0 + jnp.tanh(0.5 * h))
    # output_layer: h @ W2 + b2 (bf16 MXU operands, f32 accumulation).
    # Padded hidden units contribute 0 because their W2 rows are zero.
    out = jnp.dot(h.astype(jnp.bfloat16), w2_ref[...],
                  preferred_element_type=jnp.float32)
    o_ref[...] = (out + b2_ref[...]).astype(o_ref.dtype)


@functools.partial(jax.jit, static_argnames=("block_batch",))
def auto_loan_classifier(x, w1, b1, w2, b2, *, block_batch=8192):
    """logits = sigmoid(x @ W1 + b1) @ W2 + b2.

    x : (B, input_size) f32
    w1: (input_size, 70) f32, b1: (1, 70) f32
    w2: (70, class_num) f32, b2: (1, class_num) f32
    returns (B, class_num) f32
    """
    B, in_features = x.shape
    class_num = w2.shape[1]

    # ---- parameter prep (tiny arrays only — x is passed through untouched):
    # pad hidden 70 -> 128 and cast MXU operands to bf16.  Padded hidden units
    # see b1 = 0 -> sigmoid = 0.5, but their W2 rows are zero, so logits are
    # exactly those of the original 70-wide module.
    hp = HIDDEN_PAD - w1.shape[1]
    w1p = jnp.pad(w1, ((0, 0), (0, hp))).astype(jnp.bfloat16)
    b1p = jnp.pad(b1, ((0, 0), (0, hp))).astype(jnp.float32)
    w2p = jnp.pad(w2, ((0, hp), (0, 0))).astype(jnp.bfloat16)
    b2p = b2.astype(jnp.float32)

    # ---- batch tiling: if B fits in one tile the block equals the full batch
    # dim (always legal); otherwise use block_batch (multiple of 8) and let the
    # last block be ragged — Pallas clips the output writeback, and the garbage
    # rows in the last input block are row-local so they never pollute valid
    # output rows.  tb=8192 keeps the double-buffered VMEM footprint ~20 MiB.
    tb = min(block_batch, B)
    grid = (pl.cdiv(B, tb),)

    out = pl.pallas_call(
        mlp_kernel,
        out_shape=jax.ShapeDtypeStruct((B, class_num), jnp.float32),
        grid=grid,
        in_specs=[
            pl.BlockSpec((tb, in_features), lambda i: (i, 0)),          # x tile (pipelined, f32)
            pl.BlockSpec((in_features, HIDDEN_PAD), lambda i: (0, 0)),  # W1 resident
            pl.BlockSpec((1, HIDDEN_PAD), lambda i: (0, 0)),            # b1 resident
            pl.BlockSpec((HIDDEN_PAD, class_num), lambda i: (0, 0)),    # W2 resident
            pl.BlockSpec((1, class_num), lambda i: (0, 0)),             # b2 resident
        ],
        # class_num (4) < 128 lanes -> masked output stores; output traffic is
        # small next to the x reads, so lane-densifying (transposed slab) is
        # not worth the extra XLU/untranspose plumbing here.
        out_specs=pl.BlockSpec((tb, class_num), lambda i: (i, 0)),
        compiler_params=pltpu.CompilerParams(
            dimension_semantics=("parallel",)),
    )(x, w1p, b1p, w2p, b2p)
    return out


def init_params(key, input_size, class_num, hidden=HIDDEN):
    """Deterministic init mimicking torch.nn.Linear's U(-1/sqrt(fan_in), ...)."""
    k1, k2, k3, k4 = jax.random.split(key, 4)
    bound1 = 1.0 / jnp.sqrt(input_size)
    bound2 = 1.0 / jnp.sqrt(hidden)
    w1 = jax.random.uniform(k1, (input_size, hidden), jnp.float32, -bound1, bound1)
    b1 = jax.random.uniform(k2, (1, hidden), jnp.float32, -bound1, bound1)
    w2 = jax.random.uniform(k3, (hidden, class_num), jnp.float32, -bound2, bound2)
    b2 = jax.random.uniform(k4, (1, class_num), jnp.float32, -bound2, bound2)
    return w1, b1, w2, b2


if __name__ == "__main__":
    key = jax.random.PRNGKey(0)
    batch, input_size, class_num = 8, 32, 4

    kx, kp = jax.random.split(key)
    x = jax.random.normal(kx, (batch, input_size), jnp.float32)
    w1, b1, w2, b2 = init_params(kp, input_size, class_num)

    out = auto_loan_classifier(x, w1, b1, w2, b2)
    out = jax.block_until_ready(out)

    # Reference 1: plain-JAX mirror of the kernel's bf16-operand / f32-accum recipe.
    h_ref = jax.nn.sigmoid(
        jnp.dot(x.astype(jnp.bfloat16), w1.astype(jnp.bfloat16),
                preferred_element_type=jnp.float32) + b1)
    ref_bf16 = jnp.dot(h_ref.astype(jnp.bfloat16), w2.astype(jnp.bfloat16),
                       preferred_element_type=jnp.float32) + b2
    # Reference 2: full-f32 forward pass of the original module.
    ref_f32 = jnp.dot(jax.nn.sigmoid(jnp.dot(x, w1) + b1), w2) + b2

    assert out.shape == (batch, class_num)
    assert jnp.allclose(out, ref_bf16, atol=2e-2, rtol=2e-2)
    assert jnp.allclose(out, ref_f32, atol=6e-2, rtol=6e-2)

    print("KERNEL_OK")
</pallas_src>

<mosaic_0001>
module attributes {stable_mosaic.version = 11 : i64} {
  func.func @mlp_kernel(%arg0: i32, %arg1: memref<8x32xf32, #tpu.memory_space<vmem>>, %arg2: memref<32x128xbf16, #tpu.memory_space<vmem>>, %arg3: memref<1x128xf32, #tpu.memory_space<vmem>>, %arg4: memref<128x4xbf16, #tpu.memory_space<vmem>>, %arg5: memref<1x4xf32, #tpu.memory_space<vmem>>, %arg6: memref<8x4xf32, #tpu.memory_space<vmem>>) attributes {dimension_semantics = [#tpu.dimension_semantics<parallel>], iteration_bounds = array<i64: 1>, scalar_prefetch = 0 : i64, scratch_operands = 0 : i64, tpu.core_type = #tpu.core_type<tc>, window_params = [{transform_indices = @transform_0, window_bounds = array<i64: 8, 32>}, {pipeline_mode = #tpu.pipeline_mode<synchronous>, transform_indices = @transform_1, window_bounds = array<i64: 32, 128>}, {pipeline_mode = #tpu.pipeline_mode<synchronous>, transform_indices = @transform_2, window_bounds = array<i64: 1, 128>}, {pipeline_mode = #tpu.pipeline_mode<synchronous>, transform_indices = @transform_3, window_bounds = array<i64: 128, 4>}, {pipeline_mode = #tpu.pipeline_mode<synchronous>, transform_indices = @transform_4, window_bounds = array<i64: 1, 4>}, {transform_indices = @transform_5, window_bounds = array<i64: 8, 4>}]} {
    %c0 = arith.constant 0 : index
    %c0_0 = arith.constant 0 : index
    %0 = vector.load %arg1[%c0, %c0_0] : memref<8x32xf32, #tpu.memory_space<vmem>>, vector<8x32xf32>
    %1 = arith.truncf %0 : vector<8x32xf32> to vector<8x32xbf16>
    %c0_1 = arith.constant 0 : index
    %c0_2 = arith.constant 0 : index
    %2 = vector.load %arg2[%c0_1, %c0_2] : memref<32x128xbf16, #tpu.memory_space<vmem>>, vector<32x128xbf16>
    %cst = arith.constant dense<0.000000e+00> : vector<8x128xf32>
    %3 = tpu.matmul %1, %2, %cst {dimension_numbers = #tpu.dot_dimension_numbers<[1], [0], [0], [1], [0, 0, 1, 1], [], []>} : vector<8x32xbf16>, vector<32x128xbf16>, vector<8x128xf32> -> vector<8x128xf32>
    %c0_3 = arith.constant 0 : index
    %c0_4 = arith.constant 0 : index
    %4 = vector.load %arg3[%c0_3, %c0_4] : memref<1x128xf32, #tpu.memory_space<vmem>>, vector<1x128xf32>
    %5 = vector.broadcast %4 : vector<1x128xf32> to vector<8x128xf32>
    %6 = arith.addf %3, %5 : vector<8x128xf32>
    %cst_5 = arith.constant 5.000000e-01 : f32
    %7 = vector.broadcast %cst_5 : f32 to vector<8x128xf32>
    %8 = arith.mulf %7, %6 : vector<8x128xf32>
    %9 = math.tanh %8 : vector<8x128xf32>
    %cst_6 = arith.constant 1.000000e+00 : f32
    %10 = vector.broadcast %cst_6 : f32 to vector<8x128xf32>
    %11 = arith.addf %10, %9 : vector<8x128xf32>
    %cst_7 = arith.constant 5.000000e-01 : f32
    %12 = vector.broadcast %cst_7 : f32 to vector<8x128xf32>
    %13 = arith.mulf %12, %11 : vector<8x128xf32>
    %14 = arith.truncf %13 : vector<8x128xf32> to vector<8x128xbf16>
    %c0_8 = arith.constant 0 : index
    %c0_9 = arith.constant 0 : index
    %15 = vector.load %arg4[%c0_8, %c0_9] : memref<128x4xbf16, #tpu.memory_space<vmem>>, vector<128x4xbf16>
    %cst_10 = arith.constant dense<0.000000e+00> : vector<8x4xf32>
    %16 = tpu.matmul %14, %15, %cst_10 {dimension_numbers = #tpu.dot_dimension_numbers<[1], [0], [0], [1], [0, 0, 1, 1], [], []>} : vector<8x128xbf16>, vector<128x4xbf16>, vector<8x4xf32> -> vector<8x4xf32>
    %c0_11 = arith.constant 0 : index
    %c0_12 = arith.constant 0 : index
    %17 = vector.load %arg5[%c0_11, %c0_12] : memref<1x4xf32, #tpu.memory_space<vmem>>, vector<1x4xf32>
    %18 = vector.broadcast %17 : vector<1x4xf32> to vector<8x4xf32>
    %19 = arith.addf %16, %18 : vector<8x4xf32>
    %c0_13 = arith.constant 0 : index
    %c0_14 = arith.constant 0 : index
    %20 = vector.load %arg6[%c0_13, %c0_14] : memref<8x4xf32, #tpu.memory_space<vmem>>, vector<8x4xf32>
    tpu.vector_store %arg6[%c0_13, %c0_14], %19 {strides = array<i32>} : memref<8x4xf32, #tpu.memory_space<vmem>>, vector<8x4xf32>,
    return
  }
  func.func @transform_0(%arg0: i32) -> (i32, i32) {
    %c0_i32 = arith.constant 0 : i32
    %c0_i32_0 = arith.constant 0 : i32
    return %arg0, %c0_i32 : i32, i32
  }
  func.func @transform_1(%arg0: i32) -> (i32, i32) {
    %c0_i32 = arith.constant 0 : i32
    %c0_i32_0 = arith.constant 0 : i32
    %c0_i32_1 = arith.constant 0 : i32
    return %c0_i32, %c0_i32_0 : i32, i32
  }
  func.func @transform_2(%arg0: i32) -> (i32, i32) {
    %c0_i32 = arith.constant 0 : i32
    %c0_i32_0 = arith.constant 0 : i32
    %c0_i32_1 = arith.constant 0 : i32
    return %c0_i32, %c0_i32_0 : i32, i32
  }
  func.func @transform_3(%arg0: i32) -> (i32, i32) {
    %c0_i32 = arith.constant 0 : i32
    %c0_i32_0 = arith.constant 0 : i32
    %c0_i32_1 = arith.constant 0 : i32
    return %c0_i32, %c0_i32_0 : i32, i32
  }
  func.func @transform_4(%arg0: i32) -> (i32, i32) {
    %c0_i32 = arith.constant 0 : i32
    %c0_i32_0 = arith.constant 0 : i32
    %c0_i32_1 = arith.constant 0 : i32
    return %c0_i32, %c0_i32_0 : i32, i32
  }
  func.func @transform_5(%arg0: i32) -> (i32, i32) {
    %c0_i32 = arith.constant 0 : i32
    %c0_i32_0 = arith.constant 0 : i32
    return %arg0, %c0_i32 : i32, i32
  }
}

</mosaic_0001>

<llo_original>
// kernel: auto_loan_classifier.1
$region0: #{auto_loan_classifier.1}
  #allocation0 [shape = 'u32[]', space=smem, size = 0x4, offset = 0x4, fixed_abs, tag = 'smem constant byte address 0x4 - core index']
  #allocation1 [shape = 'u32[144,128]{1,0:T(1,128)}', space=vmem, size = 0x12000, scoped, tag = 'internal scratch']
  %s0 = inlined_call_operand.vmem [shape: f32[8,32], index: 0, kind: input, shape index: {}]
  %s1 = inlined_call_operand.vmem [shape: bf16[32,128], index: 1, kind: input, shape index: {}]
  %s2 = inlined_call_operand.vmem [shape: f32[1,128], index: 2, kind: input, shape index: {}]
  %s3 = inlined_call_operand.vmem [shape: bf16[128,4], index: 3, kind: input, shape index: {}]
  %s4 = inlined_call_operand.vmem [shape: f32[1,4], index: 4, kind: input, shape index: {}]
  %s5 = inlined_call_operand.vmem [shape: f32[8,4], index: 5, kind: output, shape index: {}]
  %s6 = sld [smem:[#allocation0]]
  $region30: #{auto_loan_classifier.1} parent=0
    _
  %s8 = ssub.s32 1, %s6
  %s9 = scalar_select 0, %s8, %s6
  // Predicated region
  $region2: #{auto_loan_classifier.1} parent=0 // pred_check
    _
  $region3: #{auto_loan_classifier.1} parent=0 // pred_check_branch
    %11 = sbr.rel (0) target = $region5
  $region4: #{auto_loan_classifier.1} parent=0 // pred_region
    _
  $region5: #{auto_loan_classifier.1} parent=0 // pred_fallthru
    _
  // Predicated region
  $region6: #{auto_loan_classifier.1} parent=0 // pred_check
    _
  $region7: #{auto_loan_classifier.1} parent=0 // pred_check_branch
    %13 = sbr.rel (0) target = $region9
  $region8: #{auto_loan_classifier.1} parent=0 // pred_region
    _
  $region9: #{auto_loan_classifier.1} parent=0 // pred_fallthru
    _
  // Predicated region
  $region10: #{auto_loan_classifier.1} parent=0 // pred_check
    _
  $region11: #{auto_loan_classifier.1} parent=0 // pred_check_branch
    %15 = sbr.rel (0) target = $region13
  $region12: #{auto_loan_classifier.1} parent=0 // pred_region
    _
  $region13: #{auto_loan_classifier.1} parent=0 // pred_fallthru
    _
  // Predicated region
  $region14: #{auto_loan_classifier.1} parent=0 // pred_check
    _
  $region15: #{auto_loan_classifier.1} parent=0 // pred_check_branch
    %17 = sbr.rel (0) target = $region17
  $region16: #{auto_loan_classifier.1} parent=0 // pred_region
    _
  $region17: #{auto_loan_classifier.1} parent=0 // pred_fallthru
    _
  // Predicated region
  $region18: #{auto_loan_classifier.1} parent=0 // pred_check
    _
  $region19: #{auto_loan_classifier.1} parent=0 // pred_check_branch
    %19 = sbr.rel (0) target = $region21
  $region20: #{auto_loan_classifier.1} parent=0 // pred_region
    _
  $region21: #{auto_loan_classifier.1} parent=0 // pred_fallthru
    _
  %v21 = vld [vmem:[%s0] sm:$0xff]
  %v22 = vpack.c.bf16 %v21, %v21
  %v23 = vld [vmem:[%s1] sm:$0xf]
  %v24 = vld [vmem:[%s1 + $0x4] sm:$0xf]
  %v25 = vld [vmem:[%s1 + $0x8] sm:$0xf]
  %v26 = vld [vmem:[%s1 + $0xc] sm:$0xf]
  %v27 = vld [vmem:[%s2] sm:$0x1]
  %v29 = vlaneseq
  %v30 = vshrl.u32 %v29, 7
  %v31 = vsub.s32 0, %v30
  %v32 = vrot.slane %v27, %v31
  %v38 = vunpack.c.l.b16 %v23
  %v39 = vunpack.c.l.b16 %v24
  %v40 = vunpack.c.l.b16 %v25
  %v41 = vunpack.c.l.b16 %v26
  %v42 = vpack.c.b16 %v39, %v38
  %v43 = vpack.c.b16 %v41, %v40
  %vm46 = vcmask 261120
  %v48 = vsel %vm46, %v22, 0
  %50 = vmatprep.subr.bf16.mxu0 0
  %51 = vmatpush1.bf16.msra.mxu0 %v42
  %52 = vmatprep.subr.bf16.mxu0 0
  %53 = vmatpush1.bf16.msra.mxu0 %v43
  %54 = vmatprep.subr.bf16.mxu0 0
  %55 = vmatpush1.bf16.msra.mxu0 0
  %56 = vmatprep.subr.bf16.mxu0 0
  %57 = vmatpush1.bf16.msra.mxu0 0
  %58 = vmatprep.subr.bf16.mxu0 0
  %59 = vmatpush1.bf16.msra.mxu0 0
  %60 = vmatprep.subr.bf16.mxu0 0
  %61 = vmatpush1.bf16.msra.mxu0 0
  %62 = vmatprep.subr.bf16.mxu0 0
  %63 = vmatpush1.bf16.msra.mxu0 0
  %64 = vmatprep.subr.bf16.mxu0 0
  %65 = vmatpush1.bf16.msra.mxu0 0
  %66 = vmatprep.subr.bf16.mxu0 0
  %67 = vmatpush1.bf16.msra.mxu0 0
  %68 = vmatprep.subr.bf16.mxu0 0
  %69 = vmatpush1.bf16.msra.mxu0 0
  %70 = vmatprep.subr.bf16.mxu0 0
  %71 = vmatpush1.bf16.msra.mxu0 0
  %72 = vmatprep.subr.bf16.mxu0 0
  %73 = vmatpush1.bf16.msra.mxu0 0
  %74 = vmatprep.subr.bf16.mxu0 0
  %75 = vmatpush1.bf16.msra.mxu0 0
  %76 = vmatprep.subr.bf16.mxu0 0
  %77 = vmatpush1.bf16.msra.mxu0 0
  %78 = vmatprep.subr.bf16.mxu0 0
  %79 = vmatpush1.bf16.msra.mxu0 0
  %80 = vmatprep.subr.bf16.mxu0 0
  %81 = vmatpush1.bf16.msra.mxu0 0
  %82 = vmatprep.mubr.bf16.mxu0 0
  %83 = vmatmul.mubr.bf16.gmra.mrb[0].mxu0 %v48
  %v84 = vpop.f32.mrb[0].mxu0
  %v85 = vadd.f32 %v32, %v84
  %v86 = vpop.f32.mrb[0].mxu0
  %v87 = vpop.f32.mrb[0].mxu0
  %v88 = vpop.f32.mrb[0].mxu0
  %89 = vdwg.mxu0
  %v90 = vmul.f32 %v85, 0.5
  %v91 = vtanh.pop %v90
  %v92 = vadd.f32 %v91, 1.0
  %v93 = vmul.f32 %v92, 0.5
  %v94 = vpack.c.bf16 %v93, %v93
  %v95 = vld [vmem:[%s3] sm:$0xf]
  %v96 = vld [vmem:[%s3 + $0x4] sm:$0xf]
  %v97 = vld [vmem:[%s3 + $0x8] sm:$0xf]
  %v98 = vld [vmem:[%s3 + $0xc] sm:$0xf]
  %v99 = vld [vmem:[%s3 + $0x10] sm:$0xf]
  %v100 = vld [vmem:[%s3 + $0x14] sm:$0xf]
  %v101 = vld [vmem:[%s3 + $0x18] sm:$0xf]
  %v102 = vld [vmem:[%s3 + $0x1c] sm:$0xf]
  %v103 = vld [vmem:[%s3 + $0x20] sm:$0xf]
  %v104 = vld [vmem:[%s3 + $0x24] sm:$0xf]
  %v105 = vld [vmem:[%s3 + $0x28] sm:$0xf]
  %v106 = vld [vmem:[%s3 + $0x2c] sm:$0xf]
  %v107 = vld [vmem:[%s3 + $0x30] sm:$0xf]
  %v108 = vld [vmem:[%s3 + $0x34] sm:$0xf]
  %v109 = vld [vmem:[%s3 + $0x38] sm:$0xf]
  %v110 = vld [vmem:[%s3 + $0x3c] sm:$0xf]
  %v111 = vld [vmem:[%s4] sm:$0x1]
  %v113 = vlaneseq
  %v114 = vshrl.u32 %v113, 7
  %v115 = vsub.s32 0, %v114
  %v116 = vrot.slane %v111, %v115
  %v134 = vunpack.c.l.b16 %v95
  %v135 = vunpack.c.l.b16 %v96
  %v136 = vunpack.c.l.b16 %v97
  %v137 = vunpack.c.l.b16 %v98
  %v138 = vunpack.c.l.b16 %v99
  %v139 = vunpack.c.l.b16 %v100
  %v140 = vunpack.c.l.b16 %v101
  %v141 = vunpack.c.l.b16 %v102
  %v142 = vunpack.c.l.b16 %v103
  %v143 = vunpack.c.l.b16 %v104
  %v144 = vunpack.c.l.b16 %v105
  %v145 = vunpack.c.l.b16 %v106
  %v146 = vunpack.c.l.b16 %v107
  %v147 = vunpack.c.l.b16 %v108
  %v148 = vunpack.c.l.b16 %v109
  %v149 = vunpack.c.l.b16 %v110
  %v150 = vpack.c.b16 %v135, %v134
  %v151 = vpack.c.b16 %v137, %v136
  %v152 = vpack.c.b16 %v139, %v138
  %v153 = vpack.c.b16 %v141, %v140
  %v154 = vpack.c.b16 %v143, %v142
  %v155 = vpack.c.b16 %v145, %v144
  %v156 = vpack.c.b16 %v147, %v146
  %v157 = vpack.c.b16 %v149, %v148
  %166 = vmatprep.subr.bf16.mxu0 0
  %167 = vmatpush1.bf16.msra.mxu0 %v150
  %168 = vmatprep.subr.bf16.mxu0 0
  %169 = vmatpush1.bf16.msra.mxu0 %v151
  %170 = vmatprep.subr.bf16.mxu0 0
  %171 = vmatpush1.bf16.msra.mxu0 %v152
  %172 = vmatprep.subr.bf16.mxu0 0
  %173 = vmatpush1.bf16.msra.mxu0 %v153
  %174 = vmatprep.subr.bf16.mxu0 0
  %175 = vmatpush1.bf16.msra.mxu0 %v154
  %176 = vmatprep.subr.bf16.mxu0 0
  %177 = vmatpush1.bf16.msra.mxu0 %v155
  %178 = vmatprep.subr.bf16.mxu0 0
  %179 = vmatpush1.bf16.msra.mxu0 %v156
  %180 = vmatprep.subr.bf16.mxu0 0
  %181 = vmatpush1.bf16.msra.mxu0 %v157
  %182 = vmatprep.subr.bf16.mxu0 0
  %183 = vmatpush1.bf16.msra.mxu0 0
  %184 = vmatprep.subr.bf16.mxu0 0
  %185 = vmatpush1.bf16.msra.mxu0 0
  %186 = vmatprep.subr.bf16.mxu0 0
  %187 = vmatpush1.bf16.msra.mxu0 0
  %188 = vmatprep.subr.bf16.mxu0 0
  %189 = vmatpush1.bf16.msra.mxu0 0
  %190 = vmatprep.subr.bf16.mxu0 0
  %191 = vmatpush1.bf16.msra.mxu0 0
  %192 = vmatprep.subr.bf16.mxu0 0
  %193 = vmatpush1.bf16.msra.mxu0 0
  %194 = vmatprep.subr.bf16.mxu0 0
  %195 = vmatpush1.bf16.msra.mxu0 0
  %196 = vmatprep.subr.bf16.mxu0 0
  %197 = vmatpush1.bf16.msra.mxu0 0
  %198 = vmatprep.mubr.bf16.mxu0 0
  %199 = vmatmul.mubr.bf16.gmra.mrb[0].mxu0 %v94
  %v200 = vpop.f32.mrb[0].mxu0
  %v201 = vadd.f32 %v116, %v200
  %v202 = vpop.f32.mrb[0].mxu0
  %v203 = vpop.f32.mrb[0].mxu0
  %v204 = vpop.f32.mrb[0].mxu0
  %205 = vdwg.mxu0
  %vm206 = vcmask 31744
  %207 = vst.msk [vmem:[%s5] sm:$0xff] %vm206, %v201
  // Predicated region
  $region22: #{auto_loan_classifier.1} parent=0 // pred_check
    _
  $region23: #{auto_loan_classifier.1} parent=0 // pred_check_branch
    %209 = sbr.rel (0) target = $region25
  $region24: #{auto_loan_classifier.1} parent=0 // pred_region
    _
  $region25: #{auto_loan_classifier.1} parent=0 // pred_fallthru
    _
  // Predicated region
  $region26: #{auto_loan_classifier.1} parent=0 // pred_check
    _
  $region27: #{auto_loan_classifier.1} parent=0 // pred_check_branch
    %211 = sbr.rel (0) target = $region29
  $region28: #{auto_loan_classifier.1} parent=0 // pred_region
    _
  $region29: #{auto_loan_classifier.1} parent=0 // pred_fallthru
    _

</llo_original>
